<compile_context>
chip_gen: v5e
topology: v5e:2x2
jax: 0.10.0
libtpu: 0.0.40
codegen_flags: <defaults>
</compile_context>

<pallas_src>
import functools

import jax
import jax.numpy as jnp
from jax import lax
from jax.experimental import pallas as pl
from jax.experimental.pallas import tpu as pltpu

EPS = 1e-5


def _conv3x3_reflect_stacked(xf, w, masks, W, slab_ref):
    """3x3 stride-1 conv with reflection pad 1, as ONE stacked-K matmul.

    xf       : (Cin, HW) float32; spatial axis flattened row-major (on lanes).
    w        : (Cout, 9*Cin) bf16; K index = (kh*3 + kw)*Cin + cin.
    masks    : (row_first, row_last, col_first, col_last), each (1, HW) bool.
    slab_ref : VMEM Ref (9*Cin, HW) float32 — K-stacked shifted taps.
    Returns (Cout, HW) float32.
    """
    row_first, row_last, col_first, col_last = masks
    C, HW = xf.shape

    # Column (W-axis) shifts with reflection: two lane rolls + border selects.
    at_jm1 = pltpu.roll(xf, shift=1, axis=1)        # value at (i, j-1)
    at_jp1 = pltpu.roll(xf, shift=HW - 1, axis=1)   # value at (i, j+1)
    c_m1 = jnp.where(col_first, at_jp1, at_jm1)     # x[:, i, reflect(j-1)]
    c_p1 = jnp.where(col_last, at_jm1, at_jp1)      # x[:, i, reflect(j+1)]

    # Row (H-axis) shifts; write all 9 taps into the K-stacked slab.
    for kw, cimg in ((0, c_m1), (1, xf), (2, c_p1)):
        at_im1 = pltpu.roll(cimg, shift=W, axis=1)       # value at (i-1, .)
        at_ip1 = pltpu.roll(cimg, shift=HW - W, axis=1)  # value at (i+1, .)
        slab_ref[(0 * 3 + kw) * C:(0 * 3 + kw + 1) * C, :] = \
            jnp.where(row_first, at_ip1, at_im1)         # x[:, reflect(i-1), .]
        slab_ref[(1 * 3 + kw) * C:(1 * 3 + kw + 1) * C, :] = cimg
        slab_ref[(2 * 3 + kw) * C:(2 * 3 + kw + 1) * C, :] = \
            jnp.where(row_last, at_im1, at_ip1)          # x[:, reflect(i+1), .]

    # Single MXU matmul per conv: bf16 operands, f32 accumulation.
    return jnp.dot(w, slab_ref[...].astype(jnp.bfloat16),
                   preferred_element_type=jnp.float32)


def _instance_norm(y, g, b, *, relu):
    """Single-pass affine InstanceNorm over the spatial (lane) axis.

    y: (C, HW) float32.  g, b: (C, 1) float32 values.
    """
    inv_n = 1.0 / y.shape[1]
    mean = jnp.sum(y, axis=1, keepdims=True) * inv_n
    var = jnp.maximum(
        jnp.sum(y * y, axis=1, keepdims=True) * inv_n - mean * mean, 0.0)
    scale = g * lax.rsqrt(var + EPS)
    shift = b - mean * scale
    out = y * scale + shift
    return jnp.maximum(out, 0.0) if relu else out


def residual_block_kernel(x_ref, w_ref, gb_ref, m_ref, o_ref, slab_ref, *, W):
    Nb = x_ref.shape[0]

    # Border masks, kept at (1, HW); jnp.where broadcasts them across channels.
    mm = m_ref[...]                       # (4, HW) int32 {0,1}: rf, rl, cf, cl
    masks = (mm[0:1, :] != 0, mm[1:2, :] != 0,
             mm[2:3, :] != 0, mm[3:4, :] != 0)

    w1 = w_ref[0]                         # (C, 9C) bf16
    w2 = w_ref[1]
    g1, be1, g2, be2 = gb_ref[0], gb_ref[1], gb_ref[2], gb_ref[3]   # (C, 1) f32

    for n in range(Nb):                   # static unroll over images in block
        xf = x_ref[n].astype(jnp.float32)                 # (C, HW)
        h = _conv3x3_reflect_stacked(xf, w1, masks, W, slab_ref)
        h = _instance_norm(h, g1, be1, relu=True)
        h = _conv3x3_reflect_stacked(h, w2, masks, W, slab_ref)
        h = _instance_norm(h, g2, be2, relu=False)
        o_ref[n] = (h + xf).astype(o_ref.dtype)


def _pick_block_n(N, C, HW, itemsize):
    """Images per grid step: amortize step overhead, keep >=2 steps when N>=2
    (so both v7x TensorCores get work), stay within a conservative VMEM budget."""
    per_img_io = 4 * C * HW * itemsize            # in + out, double-buffered
    vmem_cap = max(1, (16 * 2**20) // max(per_img_io, 1))
    nb = min(8, max(1, N // 4), vmem_cap)
    while N % nb:                                 # keep blocks exact divisors of N
        nb -= 1
    return nb


def _roundup(x, m):
    return (x + m - 1) // m * m


def residual_block(x_nchw, params, *, block_n=None):
    """x_nchw: (N, C, H, W).  params: dict with HWIO conv weights + IN affine."""
    N, C, H, W = x_nchw.shape
    assert H >= 2 and W >= 2, "reflection pad 1 requires H, W >= 2"
    HW = H * W

    x = x_nchw.reshape(N, C, HW)                  # NCHW, spatial flattened (lanes)

    # Weights: HWIO (3,3,Cin,Cout) -> (Cout, 9*Cin) bf16 with K = (kh*3+kw)*Cin+cin;
    # both convs packed into one (2, C, 9C) array (single constant DMA stream).
    def prep_w(w):
        return jnp.transpose(w, (3, 0, 1, 2)).reshape(C, 9 * C).astype(jnp.bfloat16)

    wpack = jnp.stack([prep_w(params["w1"]), prep_w(params["w2"])])      # (2, C, 9C)
    gbpack = jnp.stack([params["g1"], params["be1"],
                        params["g2"], params["be2"]]) \
        .astype(jnp.float32).reshape(4, C, 1)                            # (4, C, 1)
    # Conv biases b1/b2 deliberately not passed: InstanceNorm's mean subtraction
    # cancels a per-channel constant exactly (dead compute).

    # Border-mask pack (review-sanctioned precomputed (1,HW) masks): rows are
    # row_first, row_last, col_first, col_last as {0,1} int32.
    row = jnp.repeat(jnp.arange(H, dtype=jnp.int32), W)
    col = jnp.tile(jnp.arange(W, dtype=jnp.int32), H)
    maskpack = jnp.stack([(row == 0), (row == H - 1),
                          (col == 0), (col == W - 1)]).astype(jnp.int32)  # (4, HW)

    nb = block_n if block_n is not None else _pick_block_n(N, C, HW,
                                                           x.dtype.itemsize)
    assert N % nb == 0
    grid = (N // nb,)

    img_spec = pl.BlockSpec((nb, C, HW), lambda b: (b, 0, 0))
    w_spec = pl.BlockSpec((2, C, 9 * C), lambda b: (0, 0, 0))
    gb_spec = pl.BlockSpec((4, C, 1), lambda b: (0, 0, 0))
    m_spec = pl.BlockSpec((4, HW), lambda b: (0, 0))

    # VMEM budget derived from actual block/scratch sizes (not a flat number);
    # capped below v7x's 64 MiB/TC physical VMEM, floored at the v6e default.
    est = (4 * nb * C * HW * x.dtype.itemsize               # image in+out, 2x buf
           + 2 * wpack.size * 2                             # bf16 weights, 2x buf
           + 2 * 4 * _roundup(C, 8) * 128 * 4               # gamma/beta tiles
           + 2 * _roundup(4, 8) * _roundup(HW, 128) * 4     # border-mask tile
           + 9 * C * HW * 4                                 # f32 tap slab scratch
           + 12 * C * HW * 4)                               # live temporaries margin
    vmem_limit = int(min(60 * 2**20, max(32 * 2**20, 2 * est)))

    out = pl.pallas_call(
        functools.partial(residual_block_kernel, W=W),
        out_shape=jax.ShapeDtypeStruct((N, C, HW), x_nchw.dtype),
        grid_spec=pltpu.PrefetchScalarGridSpec(
            num_scalar_prefetch=0,
            grid=grid,                    # "parallel" -> v7x's 2 TCs split steps
            in_specs=[img_spec, w_spec, gb_spec, m_spec],
            out_specs=img_spec,
            scratch_shapes=[pltpu.VMEM((9 * C, HW), jnp.float32)],
        ),
        compiler_params=pltpu.CompilerParams(
            dimension_semantics=("parallel",),
            vmem_limit_bytes=vmem_limit),
    )(x, wpack, gbpack, maskpack)

    return out.reshape(N, C, H, W)


# ------------------------- pure-JAX references (checking) -------------------------
def _ref_forward(x_nchw, params, *, bf16_matmul=False):
    """Reference (includes conv biases).  bf16_matmul=True mirrors the kernel's
    MXU precision (bf16 operands, f32 accumulation)."""
    x = jnp.transpose(x_nchw, (0, 2, 3, 1))           # NHWC

    def conv(z, w, b):
        zp = jnp.pad(z, ((0, 0), (1, 1), (1, 1), (0, 0)), mode="reflect")
        if bf16_matmul:
            zp = zp.astype(jnp.bfloat16)
            w = w.astype(jnp.bfloat16)
        o = lax.conv_general_dilated(
            zp, w, window_strides=(1, 1), padding="VALID",
            dimension_numbers=("NHWC", "HWIO", "NHWC"),
            preferred_element_type=jnp.float32)
        return o + b.reshape(1, 1, 1, -1)

    def inorm(y, g, be):
        m = jnp.mean(y, axis=(1, 2), keepdims=True)
        v = jnp.mean((y - m) ** 2, axis=(1, 2), keepdims=True)
        return (y - m) * lax.rsqrt(v + EPS) * g.reshape(1, 1, 1, -1) \
            + be.reshape(1, 1, 1, -1)

    out = jnp.maximum(inorm(conv(x, params["w1"], params["b1"]),
                            params["g1"], params["be1"]), 0.0)
    out = inorm(conv(out, params["w2"], params["b2"]),
                params["g2"], params["be2"])
    out = out + x
    return jnp.transpose(out, (0, 3, 1, 2))


if __name__ == "__main__":
    def make_params(key, C):
        ks = jax.random.split(key, 8)
        scale = 1.0 / (3 * 3 * C) ** 0.5          # Conv2d default init scale
        return {
            "w1": jax.random.uniform(ks[0], (3, 3, C, C), jnp.float32, -scale, scale),
            "b1": jax.random.uniform(ks[1], (C,), jnp.float32, -scale, scale),
            "g1": jax.random.normal(ks[2], (C,), jnp.float32) * 0.1 + 1.0,
            "be1": jax.random.normal(ks[3], (C,), jnp.float32) * 0.1,
            "w2": jax.random.uniform(ks[4], (3, 3, C, C), jnp.float32, -scale, scale),
            "b2": jax.random.uniform(ks[5], (C,), jnp.float32, -scale, scale),
            "g2": jax.random.normal(ks[6], (C,), jnp.float32) * 0.1 + 1.0,
            "be2": jax.random.normal(ks[7], (C,), jnp.float32) * 0.1,
        }

    key = jax.random.PRNGKey(0)
    k0, k1, k2, k3 = jax.random.split(key, 4)

    # Case 1: the spec shapes (N=2, C=4, 16x16): Nb=1, grid=(2,) "parallel".
    params = make_params(k0, 4)
    x = jax.random.normal(k1, (2, 4, 16, 16), jnp.float32)
    out = residual_block(x, params)
    jax.block_until_ready(out)
    assert out.shape == x.shape

    ref_bf16 = _ref_forward(x, params, bf16_matmul=True)
    err_m = float(jnp.max(jnp.abs(out - ref_bf16)))
    assert jnp.allclose(out, ref_bf16, atol=5e-3, rtol=5e-3), err_m

    ref_f32 = _ref_forward(x, params, bf16_matmul=False)
    err_e = float(jnp.max(jnp.abs(out - ref_f32)))
    assert jnp.allclose(out, ref_f32, atol=1e-1, rtol=1e-1), err_e

    # Case 2: exercises the multi-image-per-step path (Nb=2) and odd H, W.
    params2 = make_params(k2, 4)
    x2 = jax.random.normal(k3, (8, 4, 6, 10), jnp.float32)
    out2 = residual_block(x2, params2)
    jax.block_until_ready(out2)
    ref2 = _ref_forward(x2, params2, bf16_matmul=True)
    err2 = float(jnp.max(jnp.abs(out2 - ref2)))
    assert jnp.allclose(out2, ref2, atol=5e-3, rtol=5e-3), err2

    print("KERNEL_OK")
</pallas_src>

<mosaic_0001>
module attributes {stable_mosaic.version = 11 : i64} {
  func.func @residual_block_kernel(%arg0: i32, %arg1: memref<1x4x256xf32, #tpu.memory_space<vmem>>, %arg2: memref<2x4x36xbf16, #tpu.memory_space<vmem>>, %arg3: memref<4x4x1xf32, #tpu.memory_space<vmem>>, %arg4: memref<4x256xi32, #tpu.memory_space<vmem>>, %arg5: memref<1x4x256xf32, #tpu.memory_space<vmem>>, %arg6: memref<36x256xf32, #tpu.memory_space<vmem>>) attributes {dimension_semantics = [#tpu.dimension_semantics<parallel>], iteration_bounds = array<i64: 2>, scalar_prefetch = 0 : i64, scratch_operands = 1 : i64, tpu.core_type = #tpu.core_type<tc>, window_params = [{transform_indices = @transform_0, window_bounds = array<i64: 1, 4, 256>}, {pipeline_mode = #tpu.pipeline_mode<synchronous>, transform_indices = @transform_1, window_bounds = array<i64: 2, 4, 36>}, {pipeline_mode = #tpu.pipeline_mode<synchronous>, transform_indices = @transform_2, window_bounds = array<i64: 4, 4, 1>}, {pipeline_mode = #tpu.pipeline_mode<synchronous>, transform_indices = @transform_3, window_bounds = array<i64: 4, 256>}, {transform_indices = @transform_4, window_bounds = array<i64: 1, 4, 256>}]} {
    %c0 = arith.constant 0 : index
    %c0_0 = arith.constant 0 : index
    %0 = vector.load %arg4[%c0, %c0_0] : memref<4x256xi32, #tpu.memory_space<vmem>>, vector<4x256xi32>
    %1 = vector.extract_strided_slice %0 {offsets = [0, 0], sizes = [1, 256], strides = [1, 1]} : vector<4x256xi32> to vector<1x256xi32>
    %c0_i32 = arith.constant 0 : i32
    %2 = vector.broadcast %c0_i32 : i32 to vector<1x256xi32>
    %3 = arith.cmpi ne, %1, %2 : vector<1x256xi32>
    %4 = vector.extract_strided_slice %0 {offsets = [1, 0], sizes = [1, 256], strides = [1, 1]} : vector<4x256xi32> to vector<1x256xi32>
    %c0_i32_1 = arith.constant 0 : i32
    %5 = vector.broadcast %c0_i32_1 : i32 to vector<1x256xi32>
    %6 = arith.cmpi ne, %4, %5 : vector<1x256xi32>
    %7 = vector.extract_strided_slice %0 {offsets = [2, 0], sizes = [1, 256], strides = [1, 1]} : vector<4x256xi32> to vector<1x256xi32>
    %c0_i32_2 = arith.constant 0 : i32
    %8 = vector.broadcast %c0_i32_2 : i32 to vector<1x256xi32>
    %9 = arith.cmpi ne, %7, %8 : vector<1x256xi32>
    %10 = vector.extract_strided_slice %0 {offsets = [3, 0], sizes = [1, 256], strides = [1, 1]} : vector<4x256xi32> to vector<1x256xi32>
    %c0_i32_3 = arith.constant 0 : i32
    %11 = vector.broadcast %c0_i32_3 : i32 to vector<1x256xi32>
    %12 = arith.cmpi ne, %10, %11 : vector<1x256xi32>
    %c0_4 = arith.constant 0 : index
    %c0_5 = arith.constant 0 : index
    %c0_6 = arith.constant 0 : index
    %13 = vector.load %arg2[%c0_4, %c0_5, %c0_6] : memref<2x4x36xbf16, #tpu.memory_space<vmem>>, vector<1x4x36xbf16>
    %14 = vector.shape_cast %13 : vector<1x4x36xbf16> to vector<4x36xbf16>
    %c1 = arith.constant 1 : index
    %c0_7 = arith.constant 0 : index
    %c0_8 = arith.constant 0 : index
    %15 = vector.load %arg2[%c1, %c0_7, %c0_8] : memref<2x4x36xbf16, #tpu.memory_space<vmem>>, vector<1x4x36xbf16>
    %16 = vector.shape_cast %15 : vector<1x4x36xbf16> to vector<4x36xbf16>
    %c0_9 = arith.constant 0 : index
    %c0_10 = arith.constant 0 : index
    %c0_11 = arith.constant 0 : index
    %17 = vector.load %arg3[%c0_9, %c0_10, %c0_11] : memref<4x4x1xf32, #tpu.memory_space<vmem>>, vector<1x4x1xf32>
    %18 = vector.shape_cast %17 : vector<1x4x1xf32> to vector<4x1xf32>
    %c1_12 = arith.constant 1 : index
    %c0_13 = arith.constant 0 : index
    %c0_14 = arith.constant 0 : index
    %19 = vector.load %arg3[%c1_12, %c0_13, %c0_14] : memref<4x4x1xf32, #tpu.memory_space<vmem>>, vector<1x4x1xf32>
    %20 = vector.shape_cast %19 : vector<1x4x1xf32> to vector<4x1xf32>
    %c2 = arith.constant 2 : index
    %c0_15 = arith.constant 0 : index
    %c0_16 = arith.constant 0 : index
    %21 = vector.load %arg3[%c2, %c0_15, %c0_16] : memref<4x4x1xf32, #tpu.memory_space<vmem>>, vector<1x4x1xf32>
    %22 = vector.shape_cast %21 : vector<1x4x1xf32> to vector<4x1xf32>
    %c3 = arith.constant 3 : index
    %c0_17 = arith.constant 0 : index
    %c0_18 = arith.constant 0 : index
    %23 = vector.load %arg3[%c3, %c0_17, %c0_18] : memref<4x4x1xf32, #tpu.memory_space<vmem>>, vector<1x4x1xf32>
    %24 = vector.shape_cast %23 : vector<1x4x1xf32> to vector<4x1xf32>
    %c0_19 = arith.constant 0 : index
    %c0_20 = arith.constant 0 : index
    %c0_21 = arith.constant 0 : index
    %25 = vector.load %arg1[%c0_19, %c0_20, %c0_21] : memref<1x4x256xf32, #tpu.memory_space<vmem>>, vector<1x4x256xf32>
    %26 = vector.shape_cast %25 : vector<1x4x256xf32> to vector<4x256xf32>
    %c1_i32 = arith.constant 1 : i32
    %27 = tpu.dynamic_rotate %26 by %c1_i32 dim 1 : vector<4x256xf32>, i32 -> vector<4x256xf32>
    %c255_i32 = arith.constant 255 : i32
    %28 = tpu.dynamic_rotate %26 by %c255_i32 dim 1 : vector<4x256xf32>, i32 -> vector<4x256xf32>
    %29 = vector.shape_cast %9 : vector<1x256xi1> to vector<1x256xi1>
    %30 = vector.broadcast %29 : vector<1x256xi1> to vector<4x256xi1>
    %31 = arith.select %30, %28, %27 : vector<4x256xi1>, vector<4x256xf32>
    %32 = vector.shape_cast %12 : vector<1x256xi1> to vector<1x256xi1>
    %33 = vector.broadcast %32 : vector<1x256xi1> to vector<4x256xi1>
    %34 = arith.select %33, %27, %28 : vector<4x256xi1>, vector<4x256xf32>
    %c16_i32 = arith.constant 16 : i32
    %35 = tpu.dynamic_rotate %31 by %c16_i32 dim 1 : vector<4x256xf32>, i32 -> vector<4x256xf32>
    %c240_i32 = arith.constant 240 : i32
    %36 = tpu.dynamic_rotate %31 by %c240_i32 dim 1 : vector<4x256xf32>, i32 -> vector<4x256xf32>
    %37 = vector.shape_cast %3 : vector<1x256xi1> to vector<1x256xi1>
    %38 = vector.broadcast %37 : vector<1x256xi1> to vector<4x256xi1>
    %39 = arith.select %38, %36, %35 : vector<4x256xi1>, vector<4x256xf32>
    %c0_22 = arith.constant 0 : index
    %c0_23 = arith.constant 0 : index
    %40 = vector.load %arg6[%c0_22, %c0_23] : memref<36x256xf32, #tpu.memory_space<vmem>>, vector<4x256xf32>
    tpu.vector_store %arg6[%c0_22, %c0_23], %39 {strides = array<i32>} : memref<36x256xf32, #tpu.memory_space<vmem>>, vector<4x256xf32>,
    %c12 = arith.constant 12 : index
    %c0_24 = arith.constant 0 : index
    %41 = vector.load %arg6[%c12, %c0_24] : memref<36x256xf32, #tpu.memory_space<vmem>>, vector<4x256xf32>
    tpu.vector_store %arg6[%c12, %c0_24], %31 {strides = array<i32>} : memref<36x256xf32, #tpu.memory_space<vmem>>, vector<4x256xf32>,
    %42 = vector.shape_cast %6 : vector<1x256xi1> to vector<1x256xi1>
    %43 = vector.broadcast %42 : vector<1x256xi1> to vector<4x256xi1>
    %44 = arith.select %43, %35, %36 : vector<4x256xi1>, vector<4x256xf32>
    %c24 = arith.constant 24 : index
    %c0_25 = arith.constant 0 : index
    %45 = vector.load %arg6[%c24, %c0_25] : memref<36x256xf32, #tpu.memory_space<vmem>>, vector<4x256xf32>
    tpu.vector_store %arg6[%c24, %c0_25], %44 {strides = array<i32>} : memref<36x256xf32, #tpu.memory_space<vmem>>, vector<4x256xf32>,
    %c16_i32_26 = arith.constant 16 : i32
    %46 = tpu.dynamic_rotate %26 by %c16_i32_26 dim 1 : vector<4x256xf32>, i32 -> vector<4x256xf32>
    %c240_i32_27 = arith.constant 240 : i32
    %47 = tpu.dynamic_rotate %26 by %c240_i32_27 dim 1 : vector<4x256xf32>, i32 -> vector<4x256xf32>
    %48 = vector.shape_cast %3 : vector<1x256xi1> to vector<1x256xi1>
    %49 = vector.broadcast %48 : vector<1x256xi1> to vector<4x256xi1>
    %50 = arith.select %49, %47, %46 : vector<4x256xi1>, vector<4x256xf32>
    %c4 = arith.constant 4 : index
    %c0_28 = arith.constant 0 : index
    %51 = vector.load %arg6[%c4, %c0_28] : memref<36x256xf32, #tpu.memory_space<vmem>>, vector<4x256xf32>
    tpu.vector_store %arg6[%c4, %c0_28], %50 {strides = array<i32>} : memref<36x256xf32, #tpu.memory_space<vmem>>, vector<4x256xf32>,
    %c16 = arith.constant 16 : index
    %c0_29 = arith.constant 0 : index
    %52 = vector.load %arg6[%c16, %c0_29] : memref<36x256xf32, #tpu.memory_space<vmem>>, vector<4x256xf32>
    tpu.vector_store %arg6[%c16, %c0_29], %26 {strides = array<i32>} : memref<36x256xf32, #tpu.memory_space<vmem>>, vector<4x256xf32>,
    %53 = vector.shape_cast %6 : vector<1x256xi1> to vector<1x256xi1>
    %54 = vector.broadcast %53 : vector<1x256xi1> to vector<4x256xi1>
    %55 = arith.select %54, %46, %47 : vector<4x256xi1>, vector<4x256xf32>
    %c28 = arith.constant 28 : index
    %c0_30 = arith.constant 0 : index
    %56 = vector.load %arg6[%c28, %c0_30] : memref<36x256xf32, #tpu.memory_space<vmem>>, vector<4x256xf32>
    tpu.vector_store %arg6[%c28, %c0_30], %55 {strides = array<i32>} : memref<36x256xf32, #tpu.memory_space<vmem>>, vector<4x256xf32>,
    %c16_i32_31 = arith.constant 16 : i32
    %57 = tpu.dynamic_rotate %34 by %c16_i32_31 dim 1 : vector<4x256xf32>, i32 -> vector<4x256xf32>
    %c240_i32_32 = arith.constant 240 : i32
    %58 = tpu.dynamic_rotate %34 by %c240_i32_32 dim 1 : vector<4x256xf32>, i32 -> vector<4x256xf32>
    %59 = vector.shape_cast %3 : vector<1x256xi1> to vector<1x256xi1>
    %60 = vector.broadcast %59 : vector<1x256xi1> to vector<4x256xi1>
    %61 = arith.select %60, %58, %57 : vector<4x256xi1>, vector<4x256xf32>
    %c8 = arith.constant 8 : index
    %c0_33 = arith.constant 0 : index
    %62 = vector.load %arg6[%c8, %c0_33] : memref<36x256xf32, #tpu.memory_space<vmem>>, vector<4x256xf32>
    tpu.vector_store %arg6[%c8, %c0_33], %61 {strides = array<i32>} : memref<36x256xf32, #tpu.memory_space<vmem>>, vector<4x256xf32>,
    %c20 = arith.constant 20 : index
    %c0_34 = arith.constant 0 : index
    %63 = vector.load %arg6[%c20, %c0_34] : memref<36x256xf32, #tpu.memory_space<vmem>>, vector<4x256xf32>
    tpu.vector_store %arg6[%c20, %c0_34], %34 {strides = array<i32>} : memref<36x256xf32, #tpu.memory_space<vmem>>, vector<4x256xf32>,
    %64 = vector.shape_cast %6 : vector<1x256xi1> to vector<1x256xi1>
    %65 = vector.broadcast %64 : vector<1x256xi1> to vector<4x256xi1>
    %66 = arith.select %65, %57, %58 : vector<4x256xi1>, vector<4x256xf32>
    %c32 = arith.constant 32 : index
    %c0_35 = arith.constant 0 : index
    %67 = vector.load %arg6[%c32, %c0_35] : memref<36x256xf32, #tpu.memory_space<vmem>>, vector<4x256xf32>
    tpu.vector_store %arg6[%c32, %c0_35], %66 {strides = array<i32>} : memref<36x256xf32, #tpu.memory_space<vmem>>, vector<4x256xf32>,
    %c0_36 = arith.constant 0 : index
    %c0_37 = arith.constant 0 : index
    %68 = vector.load %arg6[%c0_36, %c0_37] : memref<36x256xf32, #tpu.memory_space<vmem>>, vector<36x256xf32>
    %69 = arith.truncf %68 : vector<36x256xf32> to vector<36x256xbf16>
    %cst = arith.constant dense<0.000000e+00> : vector<4x256xf32>
    %70 = tpu.matmul %14, %69, %cst {dimension_numbers = #tpu.dot_dimension_numbers<[1], [0], [0], [1], [0, 0, 1, 1], [], []>} : vector<4x36xbf16>, vector<36x256xbf16>, vector<4x256xf32> -> vector<4x256xf32>
    %cst_38 = arith.constant dense<0.000000e+00> : vector<4xf32>
    %71 = vector.multi_reduction <add>, %70, %cst_38 [1] : vector<4x256xf32> to vector<4xf32>
    %72 = vector.shape_cast %71 : vector<4xf32> to vector<4x1xf32>
    %cst_39 = arith.constant 3.906250e-03 : f32
    %73 = vector.broadcast %cst_39 : f32 to vector<4x1xf32>
    %74 = arith.mulf %72, %73 : vector<4x1xf32>
    %75 = arith.mulf %70, %70 : vector<4x256xf32>
    %cst_40 = arith.constant dense<0.000000e+00> : vector<4xf32>
    %76 = vector.multi_reduction <add>, %75, %cst_40 [1] : vector<4x256xf32> to vector<4xf32>
    %77 = vector.shape_cast %76 : vector<4xf32> to vector<4x1xf32>
    %cst_41 = arith.constant 3.906250e-03 : f32
    %78 = vector.broadcast %cst_41 : f32 to vector<4x1xf32>
    %79 = arith.mulf %77, %78 : vector<4x1xf32>
    %80 = arith.mulf %74, %74 : vector<4x1xf32>
    %81 = arith.subf %79, %80 : vector<4x1xf32>
    %cst_42 = arith.constant 0.000000e+00 : f32
    %82 = vector.broadcast %cst_42 : f32 to vector<4x1xf32>
    %83 = arith.maximumf %81, %82 : vector<4x1xf32>
    %cst_43 = arith.constant 9.99999974E-6 : f32
    %84 = vector.broadcast %cst_43 : f32 to vector<4x1xf32>
    %85 = arith.addf %83, %84 : vector<4x1xf32>
    %86 = math.rsqrt %85 : vector<4x1xf32>
    %87 = arith.mulf %18, %86 : vector<4x1xf32>
    %88 = arith.mulf %74, %87 : vector<4x1xf32>
    %89 = arith.subf %20, %88 : vector<4x1xf32>
    %90 = vector.broadcast %87 : vector<4x1xf32> to vector<4x256xf32>
    %91 = arith.mulf %70, %90 : vector<4x256xf32>
    %92 = vector.broadcast %89 : vector<4x1xf32> to vector<4x256xf32>
    %93 = arith.addf %91, %92 : vector<4x256xf32>
    %cst_44 = arith.constant 0.000000e+00 : f32
    %94 = vector.broadcast %cst_44 : f32 to vector<4x256xf32>
    %95 = arith.maximumf %93, %94 : vector<4x256xf32>
    %c1_i32_45 = arith.constant 1 : i32
    %96 = tpu.dynamic_rotate %95 by %c1_i32_45 dim 1 : vector<4x256xf32>, i32 -> vector<4x256xf32>
    %c255_i32_46 = arith.constant 255 : i32
    %97 = tpu.dynamic_rotate %95 by %c255_i32_46 dim 1 : vector<4x256xf32>, i32 -> vector<4x256xf32>
    %98 = vector.shape_cast %9 : vector<1x256xi1> to vector<1x256xi1>
    %99 = vector.broadcast %98 : vector<1x256xi1> to vector<4x256xi1>
    %100 = arith.select %99, %97, %96 : vector<4x256xi1>, vector<4x256xf32>
    %101 = vector.shape_cast %12 : vector<1x256xi1> to vector<1x256xi1>
    %102 = vector.broadcast %101 : vector<1x256xi1> to vector<4x256xi1>
    %103 = arith.select %102, %96, %97 : vector<4x256xi1>, vector<4x256xf32>
    %c16_i32_47 = arith.constant 16 : i32
    %104 = tpu.dynamic_rotate %100 by %c16_i32_47 dim 1 : vector<4x256xf32>, i32 -> vector<4x256xf32>
    %c240_i32_48 = arith.constant 240 : i32
    %105 = tpu.dynamic_rotate %100 by %c240_i32_48 dim 1 : vector<4x256xf32>, i32 -> vector<4x256xf32>
    %106 = vector.shape_cast %3 : vector<1x256xi1> to vector<1x256xi1>
    %107 = vector.broadcast %106 : vector<1x256xi1> to vector<4x256xi1>
    %108 = arith.select %107, %105, %104 : vector<4x256xi1>, vector<4x256xf32>
    %c0_49 = arith.constant 0 : index
    %c0_50 = arith.constant 0 : index
    %109 = vector.load %arg6[%c0_49, %c0_50] : memref<36x256xf32, #tpu.memory_space<vmem>>, vector<4x256xf32>
    tpu.vector_store %arg6[%c0_49, %c0_50], %108 {strides = array<i32>} : memref<36x256xf32, #tpu.memory_space<vmem>>, vector<4x256xf32>,
    %c12_51 = arith.constant 12 : index
    %c0_52 = arith.constant 0 : index
    %110 = vector.load %arg6[%c12_51, %c0_52] : memref<36x256xf32, #tpu.memory_space<vmem>>, vector<4x256xf32>
    tpu.vector_store %arg6[%c12_51, %c0_52], %100 {strides = array<i32>} : memref<36x256xf32, #tpu.memory_space<vmem>>, vector<4x256xf32>,
    %111 = vector.shape_cast %6 : vector<1x256xi1> to vector<1x256xi1>
    %112 = vector.broadcast %111 : vector<1x256xi1> to vector<4x256xi1>
    %113 = arith.select %112, %104, %105 : vector<4x256xi1>, vector<4x256xf32>
    %c24_53 = arith.constant 24 : index
    %c0_54 = arith.constant 0 : index
    %114 = vector.load %arg6[%c24_53, %c0_54] : memref<36x256xf32, #tpu.memory_space<vmem>>, vector<4x256xf32>
    tpu.vector_store %arg6[%c24_53, %c0_54], %113 {strides = array<i32>} : memref<36x256xf32, #tpu.memory_space<vmem>>, vector<4x256xf32>,
    %c16_i32_55 = arith.constant 16 : i32
    %115 = tpu.dynamic_rotate %95 by %c16_i32_55 dim 1 : vector<4x256xf32>, i32 -> vector<4x256xf32>
    %c240_i32_56 = arith.constant 240 : i32
    %116 = tpu.dynamic_rotate %95 by %c240_i32_56 dim 1 : vector<4x256xf32>, i32 -> vector<4x256xf32>
    %117 = vector.shape_cast %3 : vector<1x256xi1> to vector<1x256xi1>
    %118 = vector.broadcast %117 : vector<1x256xi1> to vector<4x256xi1>
    %119 = arith.select %118, %116, %115 : vector<4x256xi1>, vector<4x256xf32>
    %c4_57 = arith.constant 4 : index
    %c0_58 = arith.constant 0 : index
    %120 = vector.load %arg6[%c4_57, %c0_58] : memref<36x256xf32, #tpu.memory_space<vmem>>, vector<4x256xf32>
    tpu.vector_store %arg6[%c4_57, %c0_58], %119 {strides = array<i32>} : memref<36x256xf32, #tpu.memory_space<vmem>>, vector<4x256xf32>,
    %c16_59 = arith.constant 16 : index
    %c0_60 = arith.constant 0 : index
    %121 = vector.load %arg6[%c16_59, %c0_60] : memref<36x256xf32, #tpu.memory_space<vmem>>, vector<4x256xf32>
    tpu.vector_store %arg6[%c16_59, %c0_60], %95 {strides = array<i32>} : memref<36x256xf32, #tpu.memory_space<vmem>>, vector<4x256xf32>,
    %122 = vector.shape_cast %6 : vector<1x256xi1> to vector<1x256xi1>
    %123 = vector.broadcast %122 : vector<1x256xi1> to vector<4x256xi1>
    %124 = arith.select %123, %115, %116 : vector<4x256xi1>, vector<4x256xf32>
    %c28_61 = arith.constant 28 : index
    %c0_62 = arith.constant 0 : index
    %125 = vector.load %arg6[%c28_61, %c0_62] : memref<36x256xf32, #tpu.memory_space<vmem>>, vector<4x256xf32>
    tpu.vector_store %arg6[%c28_61, %c0_62], %124 {strides = array<i32>} : memref<36x256xf32, #tpu.memory_space<vmem>>, vector<4x256xf32>,
    %c16_i32_63 = arith.constant 16 : i32
    %126 = tpu.dynamic_rotate %103 by %c16_i32_63 dim 1 : vector<4x256xf32>, i32 -> vector<4x256xf32>
    %c240_i32_64 = arith.constant 240 : i32
    %127 = tpu.dynamic_rotate %103 by %c240_i32_64 dim 1 : vector<4x256xf32>, i32 -> vector<4x256xf32>
    %128 = vector.shape_cast %3 : vector<1x256xi1> to vector<1x256xi1>
    %129 = vector.broadcast %128 : vector<1x256xi1> to vector<4x256xi1>
    %130 = arith.select %129, %127, %126 : vector<4x256xi1>, vector<4x256xf32>
    %c8_65 = arith.constant 8 : index
    %c0_66 = arith.constant 0 : index
    %131 = vector.load %arg6[%c8_65, %c0_66] : memref<36x256xf32, #tpu.memory_space<vmem>>, vector<4x256xf32>
    tpu.vector_store %arg6[%c8_65, %c0_66], %130 {strides = array<i32>} : memref<36x256xf32, #tpu.memory_space<vmem>>, vector<4x256xf32>,
    %c20_67 = arith.constant 20 : index
    %c0_68 = arith.constant 0 : index
    %132 = vector.load %arg6[%c20_67, %c0_68] : memref<36x256xf32, #tpu.memory_space<vmem>>, vector<4x256xf32>
    tpu.vector_store %arg6[%c20_67, %c0_68], %103 {strides = array<i32>} : memref<36x256xf32, #tpu.memory_space<vmem>>, vector<4x256xf32>,
    %133 = vector.shape_cast %6 : vector<1x256xi1> to vector<1x256xi1>
    %134 = vector.broadcast %133 : vector<1x256xi1> to vector<4x256xi1>
    %135 = arith.select %134, %126, %127 : vector<4x256xi1>, vector<4x256xf32>
    %c32_69 = arith.constant 32 : index
    %c0_70 = arith.constant 0 : index
    %136 = vector.load %arg6[%c32_69, %c0_70] : memref<36x256xf32, #tpu.memory_space<vmem>>, vector<4x256xf32>
    tpu.vector_store %arg6[%c32_69, %c0_70], %135 {strides = array<i32>} : memref<36x256xf32, #tpu.memory_space<vmem>>, vector<4x256xf32>,
    %c0_71 = arith.constant 0 : index
    %c0_72 = arith.constant 0 : index
    %137 = vector.load %arg6[%c0_71, %c0_72] : memref<36x256xf32, #tpu.memory_space<vmem>>, vector<36x256xf32>
    %138 = arith.truncf %137 : vector<36x256xf32> to vector<36x256xbf16>
    %cst_73 = arith.constant dense<0.000000e+00> : vector<4x256xf32>
    %139 = tpu.matmul %16, %138, %cst_73 {dimension_numbers = #tpu.dot_dimension_numbers<[1], [0], [0], [1], [0, 0, 1, 1], [], []>} : vector<4x36xbf16>, vector<36x256xbf16>, vector<4x256xf32> -> vector<4x256xf32>
    %cst_74 = arith.constant dense<0.000000e+00> : vector<4xf32>
    %140 = vector.multi_reduction <add>, %139, %cst_74 [1] : vector<4x256xf32> to vector<4xf32>
    %141 = vector.shape_cast %140 : vector<4xf32> to vector<4x1xf32>
    %cst_75 = arith.constant 3.906250e-03 : f32
    %142 = vector.broadcast %cst_75 : f32 to vector<4x1xf32>
    %143 = arith.mulf %141, %142 : vector<4x1xf32>
    %144 = arith.mulf %139, %139 : vector<4x256xf32>
    %cst_76 = arith.constant dense<0.000000e+00> : vector<4xf32>
    %145 = vector.multi_reduction <add>, %144, %cst_76 [1] : vector<4x256xf32> to vector<4xf32>
    %146 = vector.shape_cast %145 : vector<4xf32> to vector<4x1xf32>
    %cst_77 = arith.constant 3.906250e-03 : f32
    %147 = vector.broadcast %cst_77 : f32 to vector<4x1xf32>
    %148 = arith.mulf %146, %147 : vector<4x1xf32>
    %149 = arith.mulf %143, %143 : vector<4x1xf32>
    %150 = arith.subf %148, %149 : vector<4x1xf32>
    %cst_78 = arith.constant 0.000000e+00 : f32
    %151 = vector.broadcast %cst_78 : f32 to vector<4x1xf32>
    %152 = arith.maximumf %150, %151 : vector<4x1xf32>
    %cst_79 = arith.constant 9.99999974E-6 : f32
    %153 = vector.broadcast %cst_79 : f32 to vector<4x1xf32>
    %154 = arith.addf %152, %153 : vector<4x1xf32>
    %155 = math.rsqrt %154 : vector<4x1xf32>
    %156 = arith.mulf %22, %155 : vector<4x1xf32>
    %157 = arith.mulf %143, %156 : vector<4x1xf32>
    %158 = arith.subf %24, %157 : vector<4x1xf32>
    %159 = vector.broadcast %156 : vector<4x1xf32> to vector<4x256xf32>
    %160 = arith.mulf %139, %159 : vector<4x256xf32>
    %161 = vector.broadcast %158 : vector<4x1xf32> to vector<4x256xf32>
    %162 = arith.addf %160, %161 : vector<4x256xf32>
    %163 = arith.addf %162, %26 : vector<4x256xf32>
    %c0_80 = arith.constant 0 : index
    %c0_81 = arith.constant 0 : index
    %c0_82 = arith.constant 0 : index
    %164 = vector.load %arg5[%c0_80, %c0_81, %c0_82] : memref<1x4x256xf32, #tpu.memory_space<vmem>>, vector<1x4x256xf32>
    %165 = vector.shape_cast %164 : vector<1x4x256xf32> to vector<4x256xf32>
    %166 = vector.shape_cast %163 : vector<4x256xf32> to vector<1x4x256xf32>
    tpu.vector_store %arg5[%c0_80, %c0_81, %c0_82], %166 {strides = array<i32>} : memref<1x4x256xf32, #tpu.memory_space<vmem>>, vector<1x4x256xf32>,
    return
  }
  func.func @transform_0(%arg0: i32) -> (i32, i32, i32) {
    %c0_i32 = arith.constant 0 : i32
    %c0_i32_0 = arith.constant 0 : i32
    %c0_i32_1 = arith.constant 0 : i32
    return %arg0, %c0_i32, %c0_i32_0 : i32, i32, i32
  }
  func.func @transform_1(%arg0: i32) -> (i32, i32, i32) {
    %c0_i32 = arith.constant 0 : i32
    %c0_i32_0 = arith.constant 0 : i32
    %c0_i32_1 = arith.constant 0 : i32
    %c0_i32_2 = arith.constant 0 : i32
    return %c0_i32, %c0_i32_0, %c0_i32_1 : i32, i32, i32
  }
  func.func @transform_2(%arg0: i32) -> (i32, i32, i32) {
    %c0_i32 = arith.constant 0 : i32
    %c0_i32_0 = arith.constant 0 : i32
    %c0_i32_1 = arith.constant 0 : i32
    %c0_i32_2 = arith.constant 0 : i32
    return %c0_i32, %c0_i32_0, %c0_i32_1 : i32, i32, i32
  }
  func.func @transform_3(%arg0: i32) -> (i32, i32) {
    %c0_i32 = arith.constant 0 : i32
    %c0_i32_0 = arith.constant 0 : i32
    %c0_i32_1 = arith.constant 0 : i32
    return %c0_i32, %c0_i32_0 : i32, i32
  }
  func.func @transform_4(%arg0: i32) -> (i32, i32, i32) {
    %c0_i32 = arith.constant 0 : i32
    %c0_i32_0 = arith.constant 0 : i32
    %c0_i32_1 = arith.constant 0 : i32
    return %arg0, %c0_i32, %c0_i32_0 : i32, i32, i32
  }
}

</mosaic_0001>

<llo_original>
// kernel: tpu_custom_call.1
$region0: #{tpu_custom_call.1}
  #allocation0 [shape = 'u32[]', space=smem, size = 0x4, offset = 0x4, fixed_abs, tag = 'smem constant byte address 0x4 - core index']
  #allocation1 [shape = 'u32[72,128]{1,0:T(1,128)}', space=vmem, size = 0x9000, scoped, tag = 'internal scratch']
  #allocation2 [shape = 'f32[36,256]{1,0:T(8,128)}', space=vmem, size = 0xa000, scoped, tag = 'scratch operand']
  %s0 = inlined_call_operand.vmem [shape: f32[2,4,256], index: 0, kind: input, shape index: {}]
  %s1 = inlined_call_operand.vmem [shape: bf16[2,4,36], index: 1, kind: input, shape index: {}]
  %s2 = inlined_call_operand.vmem [shape: f32[4,4,1], index: 2, kind: input, shape index: {}]
  %s3 = inlined_call_operand.hbm [shape: s32[4,256], index: 3, kind: input, shape index: {}]
  %s4 = inlined_call_operand.hbm [shape: f32[2,4,256], index: 4, kind: output, shape index: {}]
  %s5 = sld [smem:[#allocation0]]
  $region53: #{tpu_custom_call.1} parent=0
    _
  %s7 = ssub.s32 1, %s5
  %s8 = scalar_select 0, %s7, %s5
  $region1: #{tpu_custom_call.1} parent=0
    #allocation3 [shape = 'u8[4096]{0}', space=vmem, size = 0x1000, scoped, tag = 'input window, operand 3, single buffered']
    #allocation4 [shape = 's32[2]{0}', space=sflag, size = 0x8, scoped, tag = 'scoped memory for tpu_custom_call.1']
    #allocation5 [shape = 's32[2]{0}', space=sflag, size = 0x8, scoped, tag = 'scoped memory for tpu_custom_call.1']
    #allocation6 [shape = 'u8[8192]{0}', space=vmem, size = 0x2000, scoped, tag = 'output window, operand 0']
    %9 = vsyncpa [#allocation4], 0
    %10 = vsyncpa [#allocation5], 0
    %s11 = scalar_lea.sflag [#allocation5], 1
    %12 = vsyncpa %s11, 0
    loop: start=0, step=1, limit=4
    $region2: #{tpu_custom_call.1} parent=1 // loop_pre_header
      _
    $region3: #{tpu_custom_call.1} parent=1 // loop_header
      %s14 = sphi 0, %s18
      %p15 = scmp.ge.s32.totalorder %s14, 4
      %s24 = sphi 0, %s26
      %s27 = sphi 0, %s24
      %s28 = sphi 0, %s27
      %s44 = sphi 0, %s28
      %s48 = sphi 0, %s48
      %s50 = sphi 0, %s48
      %s51 = sphi 0, %s50
      %s65 = sphi 0, %s51
      %s69 = sphi 0, %s69
      %s71 = sphi 0, %s69
      %s72 = sphi 0, %s71
      %s86 = sphi 0, %s72
      %s90 = sphi 0, %s90
      %s92 = sphi 0, %s90
      %s93 = sphi 0, %s92
      %s107 = sphi 0, %s93
      %s113 = sphi 0, %s115
      %s116 = sphi 0, %s113
      %s117 = sphi 0, %s116
      %s133 = sphi 0, %s117
    $region4: #{tpu_custom_call.1} parent=1 // loop_header_branch
      %17 = sbr.rel (%p15) target = $region8
    $region5: #{tpu_custom_call.1} parent=1 // loop_body
      %s19 = ssub.s32 %s14, 1
      %s20 = ssub.s32 %s14, 2
      %s21 = sadd.s32 %s14, 1
      %s22 = ssub.s32 %s14, %s21
      %p23 = scmp.eq.s32.totalorder %s22, 0
      %s25 = sadd.s32 %s24, 1
      %s26 = scalar_select %p23, %s24, %s25
      %p29 = pneg %p23
      %p30 = scmp.eq.s32.totalorder %s14, 1
      %p31 = por %p29, %p30
      %p32 = scmp.ne.s32.totalorder %s24, %s27
      %p33 = scmp.eq.s32.totalorder %s14, 0
      %p34 = por %p32, %p33
      %p35 = scmp.ne.s32.totalorder %s24, %s27
      %p36 = scmp.eq.s32.totalorder %s19, 1
      %p37 = por %p35, %p36
      %p38 = scmp.ne.s32.totalorder %s27, %s28
      %p39 = scmp.eq.s32.totalorder %s19, 0
      %p40 = por %p38, %p39
      %p41 = scmp.ne.s32.totalorder %s27, %s28
      %p42 = scmp.eq.s32.totalorder %s20, 1
      %p43 = por %p41, %p42
      %p45 = scmp.ne.s32.totalorder %s28, %s44
      %p46 = scmp.eq.s32.totalorder %s20, 0
      %p47 = por %p45, %p46
      %s49 = sadd.s32 %s48, 1
      %p52 = scmp.eq.s32.totalorder %s14, 1
      %p53 = scmp.ne.s32.totalorder %s48, %s50
      %p54 = scmp.eq.s32.totalorder %s14, 0
      %p55 = por %p53, %p54
      %p56 = scmp.ne.s32.totalorder %s48, %s50
      %p57 = scmp.eq.s32.totalorder %s19, 1
      %p58 = por %p56, %p57
      %p59 = scmp.ne.s32.totalorder %s50, %s51
      %p60 = scmp.eq.s32.totalorder %s19, 0
      %p61 = por %p59, %p60
      %p62 = scmp.ne.s32.totalorder %s50, %s51
      %p63 = scmp.eq.s32.totalorder %s20, 1
      %p64 = por %p62, %p63
      %p66 = scmp.ne.s32.totalorder %s51, %s65
      %p67 = scmp.eq.s32.totalorder %s20, 0
      %p68 = por %p66, %p67
      %s70 = sadd.s32 %s69, 1
      %p73 = scmp.eq.s32.totalorder %s14, 1
      %p74 = scmp.ne.s32.totalorder %s69, %s71
      %p75 = scmp.eq.s32.totalorder %s14, 0
      %p76 = por %p74, %p75
      %p77 = scmp.ne.s32.totalorder %s69, %s71
      %p78 = scmp.eq.s32.totalorder %s19, 1
      %p79 = por %p77, %p78
      %p80 = scmp.ne.s32.totalorder %s71, %s72
      %p81 = scmp.eq.s32.totalorder %s19, 0
      %p82 = por %p80, %p81
      %p83 = scmp.ne.s32.totalorder %s71, %s72
      %p84 = scmp.eq.s32.totalorder %s20, 1
      %p85 = por %p83, %p84
      %p87 = scmp.ne.s32.totalorder %s72, %s86
      %p88 = scmp.eq.s32.totalorder %s20, 0
      %p89 = por %p87, %p88
      %s91 = sadd.s32 %s90, 1
      %p94 = scmp.eq.s32.totalorder %s14, 1
      %p95 = scmp.ne.s32.totalorder %s90, %s92
      %p96 = scmp.eq.s32.totalorder %s14, 0
      %p97 = por %p95, %p96
      %p98 = scmp.ne.s32.totalorder %s90, %s92
      %p99 = scmp.eq.s32.totalorder %s19, 1
      %p100 = por %p98, %p99
      %p101 = scmp.ne.s32.totalorder %s92, %s93
      %p102 = scmp.eq.s32.totalorder %s19, 0
      %p103 = por %p101, %p102
      %p104 = scmp.ne.s32.totalorder %s92, %s93
      %p105 = scmp.eq.s32.totalorder %s20, 1
      %p106 = por %p104, %p105
      %p108 = scmp.ne.s32.totalorder %s93, %s107
      %p109 = scmp.eq.s32.totalorder %s20, 0
      %p110 = por %p108, %p109
      %s111 = ssub.s32 %s14, %s21
      %p112 = scmp.eq.s32.totalorder %s111, 0
      %s114 = sadd.s32 %s113, 1
      %s115 = scalar_select %p112, %s113, %s114
      %p118 = pneg %p112
      %p119 = scmp.eq.s32.totalorder %s14, 1
      %p120 = por %p118, %p119
      %p121 = scmp.ne.s32.totalorder %s113, %s116
      %p122 = scmp.eq.s32.totalorder %s14, 0
      %p123 = por %p121, %p122
      %p124 = scmp.ne.s32.totalorder %s113, %s116
      %p125 = scmp.eq.s32.totalorder %s19, 1
      %p126 = por %p124, %p125
      %p127 = scmp.ne.s32.totalorder %s116, %s117
      %p128 = scmp.eq.s32.totalorder %s19, 0
      %p129 = por %p127, %p128
      %p130 = scmp.ne.s32.totalorder %s116, %s117
      %p131 = scmp.eq.s32.totalorder %s20, 1
      %p132 = por %p130, %p131
      %p134 = scmp.ne.s32.totalorder %s117, %s133
      %p135 = scmp.eq.s32.totalorder %s20, 0
      %p136 = por %p134, %p135
      %p137 = scmp.le.s32.totalorder 1, %s14
      %p138 = scmp.lt.s32.totalorder %s14, 3
      %p139 = pnand %p137, %p138
      %p140 = pneg %p139
      // Predicated region
      $region9: #{tpu_custom_call.1} parent=5 // pred_check
        _
      $region10: #{tpu_custom_call.1} parent=5 // pred_check_branch
        %142 = sbr.rel (%p139) target = $region12
      $region11: #{tpu_custom_call.1} parent=5 // pred_region
        %s143 = ssub.s32 %s14, 1
        // Predicated region
        $region13: #{tpu_custom_call.1} parent=11 // pred_check
          %p144 = pneg %p61
        $region14: #{tpu_custom_call.1} parent=11 // pred_check_branch
          %146 = sbr.rel (%p144) target = $region16
        $region15: #{tpu_custom_call.1} parent=11 // pred_region
          _
        $region16: #{tpu_custom_call.1} parent=11 // pred_fallthru
          _
        // Predicated region
        $region17: #{tpu_custom_call.1} parent=11 // pred_check
          %p147 = pneg %p82
        $region18: #{tpu_custom_call.1} parent=11 // pred_check_branch
          %149 = sbr.rel (%p147) target = $region20
        $region19: #{tpu_custom_call.1} parent=11 // pred_region
          _
        $region20: #{tpu_custom_call.1} parent=11 // pred_fallthru
          _
        // Predicated region
        $region21: #{tpu_custom_call.1} parent=11 // pred_check
          %p150 = pneg %p103
        $region22: #{tpu_custom_call.1} parent=11 // pred_check_branch
          %152 = sbr.rel (%p150) target = $region24
        $region23: #{tpu_custom_call.1} parent=11 // pred_region
          %154 = vsyncadd [#allocation4], 0
          %s156 = sshll.u32 %s3, 4
          %s157 = int_to_ptr.hbm [resolvable:$true] %s156
          %s158 = sshll.u32 [#allocation3], 4
          %s159 = int_to_ptr.vmem [resolvable:$true] %s158
          %161 = dma.hbm_to_vmem [thread:$0]  %s157, 128, %s159, [#allocation4]
        $region24: #{tpu_custom_call.1} parent=11 // pred_fallthru
          _
      $region12: #{tpu_custom_call.1} parent=5 // pred_fallthru
        _
      %p162 = scmp.lt.s32.totalorder %s14, 2
      // Predicated region
      $region25: #{tpu_custom_call.1} parent=5 // pred_check
        %p163 = pneg %p162
      $region26: #{tpu_custom_call.1} parent=5 // pred_check_branch
        %165 = sbr.rel (%p163) target = $region28
      $region27: #{tpu_custom_call.1} parent=5 // pred_region
        // Predicated region
        $region29: #{tpu_custom_call.1} parent=27 // pred_check
          %p166 = pneg %p34
        $region30: #{tpu_custom_call.1} parent=27 // pred_check_branch
          %168 = sbr.rel (%p166) target = $region32
        $region31: #{tpu_custom_call.1} parent=27 // pred_region
          %p169 = scmp.lt.s32.totalorder %s14, 1
          %s170 = scalar_select %p169, %s14, 1
          %s171 = smul.addr %s170, 2
          %s172 = smul.addr %s171, 4
          %s173 = scalar_lea.vmem %s0, %s172
        $region32: #{tpu_custom_call.1} parent=27 // pred_fallthru
          _
      $region28: #{tpu_custom_call.1} parent=5 // pred_fallthru
        _
      %p174 = scmp.le.s32.totalorder 1, %s14
      %p175 = scmp.lt.s32.totalorder %s14, 3
      %p176 = pnand %p174, %p175
      %p177 = pneg %p176
      // Predicated region
      $region33: #{tpu_custom_call.1} parent=5 // pred_check
        _
      $region34: #{tpu_custom_call.1} parent=5 // pred_check_branch
        %179 = sbr.rel (%p176) target = $region36
      $region35: #{tpu_custom_call.1} parent=5 // pred_region
        %s180 = ssub.s32 %s14, 1
        // Predicated region
        $region37: #{tpu_custom_call.1} parent=35 // pred_check
          %p181 = pneg %p103
        $region38: #{tpu_custom_call.1} parent=35 // pred_check_branch
          %183 = sbr.rel (%p181) target = $region40
        $region39: #{tpu_custom_call.1} parent=35 // pred_region
          %185 = dma.done [#allocation4], 128
        $region40: #{tpu_custom_call.1} parent=35 // pred_fallthru
          _
        %p186 = scmp.lt.s32.totalorder %s19, 1
        %s187 = scalar_select %p186, %s19, 1
        %s188 = smul.addr %s187, 2
        %s189 = smul.addr %s188, 4
        %s190 = scalar_lea.vmem %s0, %s189
        %p191 = pneg %p40
        %p192 = pneg %p37
        %p193 = pneg %p61
        %p194 = pneg %p58
        %p195 = pneg %p82
        %p196 = pneg %p79
        %p197 = pneg %p103
        %p198 = pneg %p100
        %p199 = pneg %p129
        %p200 = pneg %p126
        %s201 = sand.u32 %s116, 1
        %s202 = scalar_lea.sflag [#allocation5], %s201
        %s203 = sand.u32 %s116, 1
        %s204 = smul.addr %s203, 8
        %s205 = scalar_lea.vmem [#allocation6], %s204
        %p206 = scmp.lt.s32.totalorder %s19, 1
        %s207 = scalar_select %p206, %s19, 1
        %s208 = smul.addr %s207, 2
        %s209 = smul.addr %s208, 4
        %s210 = scalar_lea.vmem %s0, %s209
        %v212 = vld [vmem:[#allocation3] sm:$0xff]
        %vm213 = vcmp.ne.s32.totalorder %v212, 0
        %v214 = vld [vmem:[%s1] sm:$0x3]
        %s215 = scalar_lea.vmem %s1, 2
        %v216 = vld [vmem:[%s215] sm:$0x3]
        %v217 = vld [vmem:[%s2] sm:$0xf]
        %s218 = scalar_lea.vmem %s2, 4
        %v219 = vld [vmem:[%s218] sm:$0xf]
        %s220 = scalar_lea.vmem %s2, 8
        %v221 = vld [vmem:[%s220] sm:$0xf]
        %s222 = scalar_lea.vmem %s2, 12
        %v223 = vld [vmem:[%s222] sm:$0xf]
        %v224 = vld [vmem:[%s210] sm:$0xff]
        %226 = vst [vmem:[#allocation1] ss:$2 sm:$0xff] %v224
        %v227 = vld.sshfl [vmem:[#allocation1] sm:$0xff pattern:$0x75316420]
        %v228 = vld.sshfl [vmem:[#allocation1 + $0x8] sm:$0xff pattern:$0x75316420]
        %231 = vrot.lane.b32.xlu0 %v227, 1
        %v232 = vpop.permute.xlu0 %231
        %233 = vrot.lane.b32.xlu0 %v228, 1
        %v234 = vpop.permute.xlu0 %233
        %v235 = vlaneseq
        %v236 = vand.u32 %v235, 127
        %vm237 = vcmp.lt.s32.totalorder %v236, 1
        %v238 = vsel %vm237, %v232, %v234
        %v239 = vsel %vm237, %v234, %v232
        %240 = vst [vmem:[#allocation1] ss:$2 sm:$0xff] %v224
        %v241 = vld.sshfl [vmem:[#allocation1] sm:$0xff pattern:$0x75316420]
        %v242 = vld.sshfl [vmem:[#allocation1 + $0x8] sm:$0xff pattern:$0x75316420]
        %245 = vrot.lane.b32.xlu0 %v241, 127
        %v246 = vpop.permute.xlu0 %245
        %247 = vrot.lane.b32.xlu0 %v242, 127
        %v248 = vpop.permute.xlu0 %247
        %vm249 = vcmp.lt.s32.totalorder %v236, 127
        %v250 = vsel %vm249, %v246, %v248
        %v251 = vsel %vm249, %v248, %v246
        %v252 = vsel %vm213, 1, 0
        %v253 = vperm.slane %v252, 2
        %v254 = vperm.slane %v252, 6
        %v255 = vperm.slane %v253, 2
        %v256 = vperm.slane %v254, 2
        %vm257 = vcmp.eq.s32.totalorder %v255, 1
        %vm258 = vcmp.eq.s32.totalorder %v256, 1
        %v259 = vsel %vm257, %v250, %v239
        %v260 = vsel %vm258, %v251, %v238
        %v261 = vperm.slane %v252, 3
        %v262 = vperm.slane %v252, 7
        %v263 = vperm.slane %v261, 3
        %v264 = vperm.slane %v262, 3
        %vm265 = vcmp.eq.s32.totalorder %v263, 1
        %vm266 = vcmp.eq.s32.totalorder %v264, 1
        %v267 = vsel %vm265, %v239, %v250
        %v268 = vsel %vm266, %v238, %v251
        %269 = vrot.lane.b32.xlu0 %v259, 16
        %v270 = vpop.permute.xlu0 %269
        %271 = vrot.lane.b32.xlu0 %v260, 16
        %v272 = vpop.permute.xlu0 %271
        %vm273 = vcmp.lt.s32.totalorder %v236, 16
        %v274 = vsel %vm273, %v270, %v272
        %v275 = vsel %vm273, %v272, %v270
        %276 = vrot.lane.b32.xlu0 %v259, 112
        %v277 = vpop.permute.xlu0 %276
        %278 = vrot.lane.b32.xlu0 %v260, 112
        %v279 = vpop.permute.xlu0 %278
        %vm280 = vcmp.lt.s32.totalorder %v236, 112
        %v281 = vsel %vm280, %v277, %v279
        %v282 = vsel %vm280, %v279, %v277
        %v283 = vperm.slane %v252, 0
        %v284 = vperm.slane %v252, 4
        %v285 = vperm.slane %v283, 0
        %v286 = vperm.slane %v284, 0
        %vm287 = vcmp.eq.s32.totalorder %v285, 1
        %vm288 = vcmp.eq.s32.totalorder %v286, 1
        %v289 = vsel %vm287, %v281, %v275
        %v290 = vsel %vm288, %v282, %v274
        %291 = vst [vmem:[#allocation2] sm:$0xf] %v289
        %292 = vst [vmem:[#allocation2 + $0x8] sm:$0xf] %v290
        %v295 = vrot.slane %v259, 4
        %v296 = vrot.slane %v260, 4
        %299 = vst [vmem:[#allocation2 + $0x10] sm:$0xf0] %v295
        %300 = vst [vmem:[#allocation2 + $0x18] sm:$0xf0] %v296
        %v301 = vperm.slane %v252, 1
        %v302 = vperm.slane %v252, 5
        %v303 = vperm.slane %v301, 1
        %v304 = vperm.slane %v302, 1
        %vm305 = vcmp.eq.s32.totalorder %v303, 1
        %vm306 = vcmp.eq.s32.totalorder %v304, 1
        %v307 = vsel %vm305, %v275, %v281
        %v308 = vsel %vm306, %v274, %v282
        %309 = vst [vmem:[#allocation2 + $0x30] sm:$0xf] %v307
        %310 = vst [vmem:[#allocation2 + $0x38] sm:$0xf] %v308
        %311 = vst [vmem:[#allocation1] ss:$2 sm:$0xff] %v224
        %v312 = vld.sshfl [vmem:[#allocation1] sm:$0xff pattern:$0x75316420]
        %v313 = vld.sshfl [vmem:[#allocation1 + $0x8] sm:$0xff pattern:$0x75316420]
        %316 = vrot.lane.b32.xlu0 %v312, 16
        %v317 = vpop.permute.xlu0 %316
        %318 = vrot.lane.b32.xlu0 %v313, 16
        %v319 = vpop.permute.xlu0 %318
        %v320 = vsel %vm273, %v317, %v319
        %v321 = vsel %vm273, %v319, %v317
        %322 = vst [vmem:[#allocation1] ss:$2 sm:$0xff] %v224
        %v323 = vld.sshfl [vmem:[#allocation1] sm:$0xff pattern:$0x75316420]
        %v324 = vld.sshfl [vmem:[#allocation1 + $0x8] sm:$0xff pattern:$0x75316420]
        %327 = vrot.lane.b32.xlu0 %v323, 112
        %v328 = vpop.permute.xlu0 %327
        %329 = vrot.lane.b32.xlu0 %v324, 112
        %v330 = vpop.permute.xlu0 %329
        %v331 = vsel %vm280, %v328, %v330
        %v332 = vsel %vm280, %v330, %v328
        %v333 = vsel %vm287, %v331, %v321
        %v334 = vsel %vm288, %v332, %v320
        %v337 = vrot.slane %v333, 4
        %v338 = vrot.slane %v334, 4
        %341 = vst [vmem:[#allocation2] sm:$0xf0] %v337
        %342 = vst [vmem:[#allocation2 + $0x8] sm:$0xf0] %v338
        %343 = vst [vmem:[#allocation1] ss:$2 sm:$0xff] %v224
        %v344 = vld.sshfl [vmem:[#allocation1] sm:$0xff pattern:$0x75316420]
        %v345 = vld.sshfl [vmem:[#allocation1 + $0x8] sm:$0xff pattern:$0x75316420]
        %348 = vst [vmem:[#allocation2 + $0x20] sm:$0xf] %v344
        %349 = vst [vmem:[#allocation2 + $0x28] sm:$0xf] %v345
        %v350 = vsel %vm305, %v321, %v331
        %v351 = vsel %vm306, %v320, %v332
        %v354 = vrot.slane %v350, 4
        %v355 = vrot.slane %v351, 4
        %358 = vst [vmem:[#allocation2 + $0x30] sm:$0xf0] %v354
        %359 = vst [vmem:[#allocation2 + $0x38] sm:$0xf0] %v355
        %360 = vrot.lane.b32.xlu0 %v267, 16
        %v361 = vpop.permute.xlu0 %360
        %362 = vrot.lane.b32.xlu0 %v268, 16
        %v363 = vpop.permute.xlu0 %362
        %v364 = vsel %vm273, %v361, %v363
        %v365 = vsel %vm273, %v363, %v361
        %366 = vrot.lane.b32.xlu0 %v267, 112
        %v367 = vpop.permute.xlu0 %366
        %368 = vrot.lane.b32.xlu0 %v268, 112
        %v369 = vpop.permute.xlu0 %368
        %v370 = vsel %vm280, %v367, %v369
        %v371 = vsel %vm280, %v369, %v367
        %v372 = vsel %vm287, %v370, %v365
        %v373 = vsel %vm288, %v371, %v364
        %374 = vst [vmem:[#allocation2 + $0x10] sm:$0xf] %v372
        %375 = vst [vmem:[#allocation2 + $0x18] sm:$0xf] %v373
        %v378 = vrot.slane %v267, 4
        %v379 = vrot.slane %v268, 4
        %382 = vst [vmem:[#allocation2 + $0x20] sm:$0xf0] %v378
        %383 = vst [vmem:[#allocation2 + $0x28] sm:$0xf0] %v379
        %v384 = vsel %vm305, %v365, %v370
        %v385 = vsel %vm306, %v364, %v371
        %386 = vst [vmem:[#allocation2 + $0x40] sm:$0xf] %v384
        %387 = vst [vmem:[#allocation2 + $0x48] sm:$0xf] %v385
        %v388 = vld [vmem:[#allocation2] sm:$0xff]
        %v389 = vld [vmem:[#allocation2 + $0x8] sm:$0xff]
        %v390 = vld [vmem:[#allocation2 + $0x10] sm:$0xff]
        %v391 = vld [vmem:[#allocation2 + $0x18] sm:$0xff]
        %v392 = vld [vmem:[#allocation2 + $0x20] sm:$0xff]
        %v393 = vld [vmem:[#allocation2 + $0x28] sm:$0xff]
        %v394 = vld [vmem:[#allocation2 + $0x30] sm:$0xff]
        %v395 = vld [vmem:[#allocation2 + $0x38] sm:$0xff]
        %v396 = vld [vmem:[#allocation2 + $0x40] sm:$0xf]
        %v397 = vld [vmem:[#allocation2 + $0x48] sm:$0xf]
        %v398 = vpack.c.bf16 %v390, %v388
        %v399 = vpack.c.bf16 %v391, %v389
        %v400 = vpack.c.bf16 %v394, %v392
        %v401 = vpack.c.bf16 %v395, %v393
        %v402 = vpack.c.bf16 %v396, %v396
        %v403 = vpack.c.bf16 %v397, %v397
        %vm404 = vcmask 293888
        %v406 = vsel %vm404, %v214, 0
        %vm408 = vcmask 1041408
        %v410 = vsel %vm408, %v402, 0
        %v413 = vsel %vm408, %v403, 0
        %415 = vmatpush.bf16.msra.mxu0 0
        %416 = vmatpush.bf16.msra.mxu0 0
        %417 = vmatpush.bf16.msra.mxu0 0
        %418 = vmatpush.bf16.msra.mxu0 0
        %419 = vmatpush.bf16.msra.mxu0 0
        %420 = vmatpush.bf16.msra.mxu0 %v410
        %421 = vmatpush.bf16.msra.mxu0 %v400
        %422 = vmatpush.bf16.msra.mxu0 %v398
        %423 = vmatmul.bf16.gmra.mxu0 %v406
        %v424 = vpop.f32.mrf.mxu0
        %v425 = vadd.f32 0.0, %v424
        %v426 = vpop.f32.mrf.mxu0
        %427 = vdwg.mxu0
        %428 = vmatpush.bf16.msra.mxu0 0
        %429 = vmatpush.bf16.msra.mxu0 0
        %430 = vmatpush.bf16.msra.mxu0 0
        %431 = vmatpush.bf16.msra.mxu0 0
        %432 = vmatpush.bf16.msra.mxu0 0
        %433 = vmatpush.bf16.msra.mxu0 %v413
        %434 = vmatpush.bf16.msra.mxu0 %v401
        %435 = vmatpush.bf16.msra.mxu0 %v399
        %436 = vmatmul.bf16.gmra.mxu0 %v406
        %v437 = vpop.f32.mrf.mxu0
        %v438 = vadd.f32 0.0, %v437
        %v439 = vpop.f32.mrf.mxu0
        %440 = vdwg.mxu0
        %vm441 = vcmask 1043456
        %v442 = vsel %vm441, %v425, 0.0
        %v443 = vsel %vm441, %v438, 0.0
        %v444 = vadd.f32 %v442, %v443
        %445 = vadd.xlane.f32.xlu0 %v444
        %v446 = vpop.xlane.xlu0 %445
        %v447 = vmul.f32 %v446, 0.00390625
        %v448 = vmul.f32 %v425, %v425
        %v449 = vmul.f32 %v438, %v438
        %v450 = vsel %vm441, %v448, 0.0
        %v451 = vsel %vm441, %v449, 0.0
        %v452 = vadd.f32 %v450, %v451
        %453 = vadd.xlane.f32.xlu0 %v452
        %v454 = vpop.xlane.xlu0 %453
        %v455 = vmul.f32 %v454, 0.00390625
        %v456 = vmul.f32 %v447, %v447
        %v457 = vsub.f32 %v455, %v456
        %v458 = vmax.f32 %v457, 0.0
        %v459 = vadd.f32 %v458, 1e-05
        %v460 = vrsqrt.pop %v459
        %v461 = vmul.f32 %v460, %v459
        %v462 = vmul.f32 %v461, %v460
        %v463 = vmul.f32 0.5, %v462
        %v464 = vsub.f32 1.5, %v463
        %v465 = vmul.f32 %v460, %v464
        %vm466 = vweird.f32 %v459
        %vm467 = vweird.f32 %v460
        %vm468 = vmor %vm466, %vm467
        %v469 = vsel %vm468, %v460, %v465
        %v470 = vmul.f32 %v217, %v469
        %v471 = vmul.f32 %v447, %v470
        %v472 = vsub.f32 %v219, %v471
        %474 = vset.pattern.permute.xlu0 0
        %475 = vperm.xlu0 %474, %v470
        %v476 = vpop.permute.xlu0 %475
        %v478 = vmul.f32 %v425, %v476
        %v479 = vmul.f32 %v438, %v476
        %481 = vset.pattern.permute.xlu0 0
        %482 = vperm.xlu0 %481, %v472
        %v483 = vpop.permute.xlu0 %482
        %v485 = vadd.f32 %v478, %v483
        %v486 = vadd.f32 %v479, %v483
        %v487 = vmax.f32 %v485, 0.0
        %v488 = vmax.f32 %v486, 0.0
        %489 = vrot.lane.b32.xlu0 %v487, 1
        %v490 = vpop.permute.xlu0 %489
        %491 = vrot.lane.b32.xlu0 %v488, 1
        %v492 = vpop.permute.xlu0 %491
        %v493 = vsel %vm237, %v490, %v492
        %v494 = vsel %vm237, %v492, %v490
        %495 = vrot.lane.b32.xlu0 %v487, 127
        %v496 = vpop.permute.xlu0 %495
        %497 = vrot.lane.b32.xlu0 %v488, 127
        %v498 = vpop.permute.xlu0 %497
        %v499 = vsel %vm249, %v496, %v498
        %v500 = vsel %vm249, %v498, %v496
        %v501 = vsel %vm257, %v499, %v494
        %v502 = vsel %vm258, %v500, %v493
        %v503 = vsel %vm265, %v494, %v499
        %v504 = vsel %vm266, %v493, %v500
        %505 = vrot.lane.b32.xlu0 %v501, 16
        %v506 = vpop.permute.xlu0 %505
        %507 = vrot.lane.b32.xlu0 %v502, 16
        %v508 = vpop.permute.xlu0 %507
        %v509 = vsel %vm273, %v506, %v508
        %v510 = vsel %vm273, %v508, %v506
        %511 = vrot.lane.b32.xlu0 %v501, 112
        %v512 = vpop.permute.xlu0 %511
        %513 = vrot.lane.b32.xlu0 %v502, 112
        %v514 = vpop.permute.xlu0 %513
        %v515 = vsel %vm280, %v512, %v514
        %v516 = vsel %vm280, %v514, %v512
        %v517 = vsel %vm287, %v515, %v510
        %v518 = vsel %vm288, %v516, %v509
        %519 = vst [vmem:[#allocation2] sm:$0xf] %v517
        %520 = vst [vmem:[#allocation2 + $0x8] sm:$0xf] %v518
        %v523 = vrot.slane %v501, 4
        %v524 = vrot.slane %v502, 4
        %527 = vst [vmem:[#allocation2 + $0x10] sm:$0xf0] %v523
        %528 = vst [vmem:[#allocation2 + $0x18] sm:$0xf0] %v524
        %v529 = vsel %vm305, %v510, %v515
        %v530 = vsel %vm306, %v509, %v516
        %531 = vst [vmem:[#allocation2 + $0x30] sm:$0xf] %v529
        %532 = vst [vmem:[#allocation2 + $0x38] sm:$0xf] %v530
        %533 = vrot.lane.b32.xlu0 %v487, 16
        %v534 = vpop.permute.xlu0 %533
        %535 = vrot.lane.b32.xlu0 %v488, 16
        %v536 = vpop.permute.xlu0 %535
        %v537 = vsel %vm273, %v534, %v536
        %v538 = vsel %vm273, %v536, %v534
        %539 = vrot.lane.b32.xlu0 %v487, 112
        %v540 = vpop.permute.xlu0 %539
        %541 = vrot.lane.b32.xlu0 %v488, 112
        %v542 = vpop.permute.xlu0 %541
        %v543 = vsel %vm280, %v540, %v542
        %v544 = vsel %vm280, %v542, %v540
        %v545 = vsel %vm287, %v543, %v538
        %v546 = vsel %vm288, %v544, %v537
        %v549 = vrot.slane %v545, 4
        %v550 = vrot.slane %v546, 4
        %553 = vst [vmem:[#allocation2] sm:$0xf0] %v549
        %554 = vst [vmem:[#allocation2 + $0x8] sm:$0xf0] %v550
        %555 = vst [vmem:[#allocation2 + $0x20] sm:$0xf] %v487
        %556 = vst [vmem:[#allocation2 + $0x28] sm:$0xf] %v488
        %v557 = vsel %vm305, %v538, %v543
        %v558 = vsel %vm306, %v537, %v544
        %v561 = vrot.slane %v557, 4
        %v562 = vrot.slane %v558, 4
        %565 = vst [vmem:[#allocation2 + $0x30] sm:$0xf0] %v561
        %566 = vst [vmem:[#allocation2 + $0x38] sm:$0xf0] %v562
        %567 = vrot.lane.b32.xlu0 %v503, 16
        %v568 = vpop.permute.xlu0 %567
        %569 = vrot.lane.b32.xlu0 %v504, 16
        %v570 = vpop.permute.xlu0 %569
        %v571 = vsel %vm273, %v568, %v570
        %v572 = vsel %vm273, %v570, %v568
        %573 = vrot.lane.b32.xlu0 %v503, 112
        %v574 = vpop.permute.xlu0 %573
        %575 = vrot.lane.b32.xlu0 %v504, 112
        %v576 = vpop.permute.xlu0 %575
        %v577 = vsel %vm280, %v574, %v576
        %v578 = vsel %vm280, %v576, %v574
        %v579 = vsel %vm287, %v577, %v572
        %v580 = vsel %vm288, %v578, %v571
        %581 = vst [vmem:[#allocation2 + $0x10] sm:$0xf] %v579
        %582 = vst [vmem:[#allocation2 + $0x18] sm:$0xf] %v580
        %v585 = vrot.slane %v503, 4
        %v586 = vrot.slane %v504, 4
        %589 = vst [vmem:[#allocation2 + $0x20] sm:$0xf0] %v585
        %590 = vst [vmem:[#allocation2 + $0x28] sm:$0xf0] %v586
        %v591 = vsel %vm305, %v572, %v577
        %v592 = vsel %vm306, %v571, %v578
        %593 = vst [vmem:[#allocation2 + $0x40] sm:$0xf] %v591
        %594 = vst [vmem:[#allocation2 + $0x48] sm:$0xf] %v592
        %v595 = vld [vmem:[#allocation2] sm:$0xff]
        %v596 = vld [vmem:[#allocation2 + $0x8] sm:$0xff]
        %v597 = vld [vmem:[#allocation2 + $0x10] sm:$0xff]
        %v598 = vld [vmem:[#allocation2 + $0x18] sm:$0xff]
        %v599 = vld [vmem:[#allocation2 + $0x20] sm:$0xff]
        %v600 = vld [vmem:[#allocation2 + $0x28] sm:$0xff]
        %v601 = vld [vmem:[#allocation2 + $0x30] sm:$0xff]
        %v602 = vld [vmem:[#allocation2 + $0x38] sm:$0xff]
        %v603 = vld [vmem:[#allocation2 + $0x40] sm:$0xf]
        %v604 = vld [vmem:[#allocation2 + $0x48] sm:$0xf]
        %v605 = vpack.c.bf16 %v597, %v595
        %v606 = vpack.c.bf16 %v598, %v596
        %v607 = vpack.c.bf16 %v601, %v599
        %v608 = vpack.c.bf16 %v602, %v600
        %v609 = vpack.c.bf16 %v603, %v603
        %v610 = vpack.c.bf16 %v604, %v604
        %v612 = vsel %vm404, %v216, 0
        %v615 = vsel %vm408, %v609, 0
        %v618 = vsel %vm408, %v610, 0
        %620 = vmatpush.bf16.msra.mxu0 0
        %621 = vmatpush.bf16.msra.mxu0 0
        %622 = vmatpush.bf16.msra.mxu0 0
        %623 = vmatpush.bf16.msra.mxu0 0
        %624 = vmatpush.bf16.msra.mxu0 0
        %625 = vmatpush.bf16.msra.mxu0 %v615
        %626 = vmatpush.bf16.msra.mxu0 %v607
        %627 = vmatpush.bf16.msra.mxu0 %v605
        %628 = vmatmul.bf16.gmra.mxu0 %v612
        %v629 = vpop.f32.mrf.mxu0
        %v630 = vadd.f32 0.0, %v629
        %v631 = vpop.f32.mrf.mxu0
        %632 = vdwg.mxu0
        %633 = vmatpush.bf16.msra.mxu0 0
        %634 = vmatpush.bf16.msra.mxu0 0
        %635 = vmatpush.bf16.msra.mxu0 0
        %636 = vmatpush.bf16.msra.mxu0 0
        %637 = vmatpush.bf16.msra.mxu0 0
        %638 = vmatpush.bf16.msra.mxu0 %v618
        %639 = vmatpush.bf16.msra.mxu0 %v608
        %640 = vmatpush.bf16.msra.mxu0 %v606
        %641 = vmatmul.bf16.gmra.mxu0 %v612
        %v642 = vpop.f32.mrf.mxu0
        %v643 = vadd.f32 0.0, %v642
        %v644 = vpop.f32.mrf.mxu0
        %645 = vdwg.mxu0
        %v646 = vsel %vm441, %v630, 0.0
        %v647 = vsel %vm441, %v643, 0.0
        %v648 = vadd.f32 %v646, %v647
        %649 = vadd.xlane.f32.xlu0 %v648
        %v650 = vpop.xlane.xlu0 %649
        %v651 = vmul.f32 %v650, 0.00390625
        %v652 = vmul.f32 %v630, %v630
        %v653 = vmul.f32 %v643, %v643
        %v654 = vsel %vm441, %v652, 0.0
        %v655 = vsel %vm441, %v653, 0.0
        %v656 = vadd.f32 %v654, %v655
        %657 = vadd.xlane.f32.xlu0 %v656
        %v658 = vpop.xlane.xlu0 %657
        %v659 = vmul.f32 %v658, 0.00390625
        %v660 = vmul.f32 %v651, %v651
        %v661 = vsub.f32 %v659, %v660
        %v662 = vmax.f32 %v661, 0.0
        %v663 = vadd.f32 %v662, 1e-05
        %v664 = vrsqrt.pop %v663
        %v665 = vmul.f32 %v664, %v663
        %v666 = vmul.f32 %v665, %v664
        %v667 = vmul.f32 0.5, %v666
        %v668 = vsub.f32 1.5, %v667
        %v669 = vmul.f32 %v664, %v668
        %vm670 = vweird.f32 %v663
        %vm671 = vweird.f32 %v664
        %vm672 = vmor %vm670, %vm671
        %v673 = vsel %vm672, %v664, %v669
        %v674 = vmul.f32 %v221, %v673
        %v675 = vmul.f32 %v651, %v674
        %v676 = vsub.f32 %v223, %v675
        %678 = vset.pattern.permute.xlu0 0
        %679 = vperm.xlu0 %678, %v674
        %v680 = vpop.permute.xlu0 %679
        %v682 = vmul.f32 %v630, %v680
        %v683 = vmul.f32 %v643, %v680
        %685 = vset.pattern.permute.xlu0 0
        %686 = vperm.xlu0 %685, %v676
        %v687 = vpop.permute.xlu0 %686
        %v689 = vadd.f32 %v682, %v687
        %v690 = vadd.f32 %v683, %v687
        %691 = vst [vmem:[#allocation1] ss:$2 sm:$0xff] %v224
        %v692 = vld.sshfl [vmem:[#allocation1] sm:$0xff pattern:$0x75316420]
        %v693 = vld.sshfl [vmem:[#allocation1 + $0x8] sm:$0xff pattern:$0x75316420]
        %v696 = vadd.f32 %v689, %v692
        %v697 = vadd.f32 %v690, %v693
        %v700 = vrot.slane %v697, 4
        %v701 = vsel %vm441, %v696, %v700
        %703 = vst [vmem:[%s205] sm:$0xff] %v701
        %s704 = sand.u32 %s116, 1
        %s705 = scalar_lea.sflag [#allocation5], %s704
        %s706 = sand.u32 %s116, 1
        %s707 = smul.addr %s706, 8
        %s708 = scalar_lea.vmem [#allocation6], %s707
        // Predicated region
        $region41: #{tpu_custom_call.1} parent=35 // pred_check
          %p709 = pneg %p126
        $region42: #{tpu_custom_call.1} parent=35 // pred_check_branch
          %711 = sbr.rel (%p709) target = $region44
        $region43: #{tpu_custom_call.1} parent=35 // pred_region
          %713 = vsyncadd %s705, 0
          %s714 = smul.addr %s19, 2
          %s715 = smul.addr %s714, 4
          %s716 = scalar_lea.hbm %s4, %s715
          %s718 = sshll.u32 %s708, 4
          %s719 = int_to_ptr.vmem [resolvable:$true] %s718
          %s720 = sshll.u32 %s716, 4
          %s721 = int_to_ptr.hbm [resolvable:$true] %s720
          %723 = dma.vmem_to_hbm [thread:$0]  %s719, 128, %s721, %s705
        $region44: #{tpu_custom_call.1} parent=35 // pred_fallthru
          _
      $region36: #{tpu_custom_call.1} parent=5 // pred_fallthru
        _
      %p724 = scmp.le.s32.totalorder 2, %s14
      // Predicated region
      $region45: #{tpu_custom_call.1} parent=5 // pred_check
        %p725 = pneg %p724
      $region46: #{tpu_custom_call.1} parent=5 // pred_check_branch
        %727 = sbr.rel (%p725) target = $region48
      $region47: #{tpu_custom_call.1} parent=5 // pred_region
        %s728 = ssub.s32 %s14, 2
        // Predicated region
        $region49: #{tpu_custom_call.1} parent=47 // pred_check
          %p729 = pneg %p132
        $region50: #{tpu_custom_call.1} parent=47 // pred_check_branch
          %731 = sbr.rel (%p729) target = $region52
        $region51: #{tpu_custom_call.1} parent=47 // pred_region
          %s732 = sand.u32 %s117, 1
          %s733 = scalar_lea.sflag [#allocation5], %s732
          %s734 = sand.u32 %s117, 1
          %s735 = smul.addr %s734, 8
          %s736 = scalar_lea.vmem [#allocation6], %s735
          %738 = dma.done %s733, 128
        $region52: #{tpu_custom_call.1} parent=47 // pred_fallthru
          _
      $region48: #{tpu_custom_call.1} parent=5 // pred_fallthru
        _
    $region6: #{tpu_custom_call.1} parent=1 // loop_footer
      %s18 = sadd.s32 1, %s14
    $region7: #{tpu_custom_call.1} parent=1 // loop_footer_branch
      %13 = sbr.rel target = $region3
    $region8: #{tpu_custom_call.1} parent=1 // loop_exit
      _
    %739 = vsyncpa [#allocation4], 1
    %s740 = scalar_lea.sflag [#allocation4], 1
    %741 = vsyncpa %s740, 1
    %742 = vsyncpa [#allocation5], 1
    %s743 = scalar_lea.sflag [#allocation5], 1
    %744 = vsyncpa %s743, 1

</llo_original>
